<compile_context>
chip_gen: v7x
topology: tpu7x:2x2x1
jax: 0.10.0
libtpu: 0.0.40
codegen_flags: <defaults>
</compile_context>

<pallas_src>
import functools

import jax
import jax.numpy as jnp
from jax.experimental import pallas as pl
from jax.experimental.pallas import tpu as pltpu


def simple_rnn_kernel(x_ref, w_ih_ref, w_hh_ref, b_ref, w_fc_ref, b_fc_ref,
                      out_ref, *, B, T):
    # x_ref:    (T*B, I)  bf16, time-major flattened input
    # w_ih_ref: (I, Hp)   bf16
    # w_hh_ref: (Hp, Hp)  bf16
    # b_ref:    (1, Hp)   f32  (b_ih + b_hh, padded)
    # w_fc_ref: (Hp, Op)  bf16
    # b_fc_ref: (1, Op)   f32
    # out_ref:  (B, Op)   f32

    bf16 = jnp.bfloat16

    # Hoisted input projection: one big bf16 matmul (f32 accumulate) + fused
    # bias, off the serial path.
    xw = (jnp.dot(x_ref[...], w_ih_ref[...], preferred_element_type=jnp.float32)
          + b_ref[...])                                        # (T*B, Hp) f32

    # Loop-invariant bf16 weight -> MXU weight push hoisted out of the loop.
    w_hh = w_hh_ref[...]                                       # (Hp, Hp) bf16

    # Serial tanh recurrence, fully unrolled (T is a small static constant).
    # h0 = 0 (PyTorch default) => first step is just tanh(x0 @ W_ih + b).
    # Each slice starts at a multiple of B (B is a multiple of 8) -> tile aligned.
    h = jnp.tanh(xw[0:B, :])                                   # (B, Hp) f32
    for t in range(1, T):
        h = jnp.tanh(
            jnp.dot(h.astype(bf16), w_hh, preferred_element_type=jnp.float32)
            + xw[t * B:(t + 1) * B, :])

    # Final linear layer on the last timestep's hidden state.
    out = (jnp.dot(h.astype(bf16), w_fc_ref[...],
                   preferred_element_type=jnp.float32)
           + b_fc_ref[...])                                    # (B, Op) f32
    out_ref[...] = out.astype(out_ref.dtype)


def prepare_params(w_ih, w_hh, b_ih, b_hh, w_fc, b_fc):
    """One-time parameter preparation (padding + bias fusion), off the per-call path."""
    I, H = w_ih.shape
    O = w_fc.shape[1]
    H_pad = max(128, ((H + 127) // 128) * 128)
    O_pad = max(128, ((O + 127) // 128) * 128)

    f32, bf16 = jnp.float32, jnp.bfloat16
    w_ih_p = jnp.zeros((I, H_pad), bf16).at[:, :H].set(w_ih.astype(bf16))
    w_hh_p = jnp.zeros((H_pad, H_pad), bf16).at[:H, :H].set(w_hh.astype(bf16))
    b_p = jnp.zeros((1, H_pad), f32).at[:, :H].set(
        (b_ih + b_hh).reshape(1, H).astype(f32))                      # fused bias
    w_fc_p = jnp.zeros((H_pad, O_pad), bf16).at[:H, :O].set(w_fc.astype(bf16))
    b_fc_p = jnp.zeros((1, O_pad), f32).at[:, :O].set(b_fc.reshape(1, O).astype(f32))

    return {"w_ih": w_ih_p, "w_hh": w_hh_p, "b": b_p,
            "w_fc": w_fc_p, "b_fc": b_fc_p}


@functools.partial(jax.jit, static_argnames=("out_dim",))
def simple_rnn_forward(x, params, *, out_dim):
    B, T, I = x.shape
    O_pad = params["w_fc"].shape[1]

    # Keep per-timestep slices (8,128)-tile aligned by padding the batch to a
    # multiple of 8 (padded rows are zero; their outputs are sliced off).
    B_pad = ((B + 7) // 8) * 8

    # Time-major, flattened, bf16 input: row (t*B_pad + b) is x[b, t, :].
    # Inside jit this transpose/pad/cast fuses into the pallas_call boundary.
    x_tb = jnp.transpose(x, (1, 0, 2)).astype(jnp.bfloat16)          # (T, B, I)
    if B_pad != B:
        x_tb = jnp.pad(x_tb, ((0, 0), (0, B_pad - B), (0, 0)))
    x_tb = x_tb.reshape(T * B_pad, I)

    kernel = functools.partial(simple_rnn_kernel, B=B_pad, T=T)

    vmem = pl.BlockSpec(memory_space=pltpu.MemorySpace.VMEM)
    out_p = pl.pallas_call(
        kernel,
        out_shape=jax.ShapeDtypeStruct((B_pad, O_pad), jnp.float32),
        in_specs=[vmem] * 6,
        out_specs=vmem,
    )(x_tb, params["w_ih"], params["w_hh"], params["b"],
      params["w_fc"], params["b_fc"])

    # Slice away batch/lane padding.
    return out_p[:B, :out_dim]


def reference_forward(x, w_ih, w_hh, b_ih, b_hh, w_fc, b_fc):
    B, T, I = x.shape
    H = w_hh.shape[0]
    h = jnp.zeros((B, H), jnp.float32)
    for t in range(T):
        h = jnp.tanh(x[:, t, :] @ w_ih + h @ w_hh + b_ih[0] + b_hh[0])
    return h @ w_fc + b_fc[0]


if __name__ == "__main__":
    # Small shapes consistent with the module: batch=8, seq=8, input=16,
    # hidden=32, output=8.
    B, T, I, H, O = 8, 8, 16, 32, 8

    key = jax.random.PRNGKey(0)
    kx, k1, k2, k3, k4, k5, k6 = jax.random.split(key, 7)

    x = jax.random.normal(kx, (B, T, I), dtype=jnp.float32)

    # Deterministic parameter init (uniform like PyTorch's default scale).
    s_rnn = 1.0 / jnp.sqrt(H)
    s_fc = 1.0 / jnp.sqrt(H)
    w_ih = jax.random.uniform(k1, (I, H), jnp.float32, -s_rnn, s_rnn)
    w_hh = jax.random.uniform(k2, (H, H), jnp.float32, -s_rnn, s_rnn)
    b_ih = jax.random.uniform(k3, (1, H), jnp.float32, -s_rnn, s_rnn)
    b_hh = jax.random.uniform(k4, (1, H), jnp.float32, -s_rnn, s_rnn)
    w_fc = jax.random.uniform(k5, (H, O), jnp.float32, -s_fc, s_fc)
    b_fc = jax.random.uniform(k6, (1, O), jnp.float32, -s_fc, s_fc)

    # One-time padding / bias fusion (off the per-call path).
    params = jax.tree_util.tree_map(
        jax.block_until_ready, prepare_params(w_ih, w_hh, b_ih, b_hh, w_fc, b_fc))

    out = simple_rnn_forward(x, params, out_dim=O)
    out = jax.block_until_ready(out)

    ref = reference_forward(x, w_ih, w_hh, b_ih, b_hh, w_fc, b_fc)
    assert out.shape == (B, O)
    # bf16 matmul inputs (f32 accumulate) -> looser tolerance vs. the f32 reference.
    assert jnp.allclose(out, ref, atol=5e-2, rtol=5e-2), "mismatch vs reference"

    print("KERNEL_OK")
</pallas_src>

<mosaic_0001>
module attributes {stable_mosaic.version = 11 : i64} {
  func.func @simple_rnn_kernel(%arg0: memref<64x16xbf16, #tpu.memory_space<vmem>>, %arg1: memref<16x128xbf16, #tpu.memory_space<vmem>>, %arg2: memref<128x128xbf16, #tpu.memory_space<vmem>>, %arg3: memref<1x128xf32, #tpu.memory_space<vmem>>, %arg4: memref<128x128xbf16, #tpu.memory_space<vmem>>, %arg5: memref<1x128xf32, #tpu.memory_space<vmem>>, %arg6: memref<8x128xf32, #tpu.memory_space<vmem>>) attributes {dimension_semantics = [], scalar_prefetch = 0 : i64, scratch_operands = 0 : i64, tpu.core_type = #tpu.core_type<tc>} {
    %c0 = arith.constant 0 : index
    %c0_0 = arith.constant 0 : index
    %0 = vector.load %arg0[%c0, %c0_0] : memref<64x16xbf16, #tpu.memory_space<vmem>>, vector<64x16xbf16>
    %c0_1 = arith.constant 0 : index
    %c0_2 = arith.constant 0 : index
    %1 = vector.load %arg1[%c0_1, %c0_2] : memref<16x128xbf16, #tpu.memory_space<vmem>>, vector<16x128xbf16>
    %cst = arith.constant dense<0.000000e+00> : vector<64x128xf32>
    %2 = tpu.matmul %0, %1, %cst {dimension_numbers = #tpu.dot_dimension_numbers<[1], [0], [0], [1], [0, 0, 1, 1], [], []>} : vector<64x16xbf16>, vector<16x128xbf16>, vector<64x128xf32> -> vector<64x128xf32>
    %c0_3 = arith.constant 0 : index
    %c0_4 = arith.constant 0 : index
    %3 = vector.load %arg3[%c0_3, %c0_4] : memref<1x128xf32, #tpu.memory_space<vmem>>, vector<1x128xf32>
    %4 = vector.broadcast %3 : vector<1x128xf32> to vector<64x128xf32>
    %5 = arith.addf %2, %4 : vector<64x128xf32>
    %c0_5 = arith.constant 0 : index
    %c0_6 = arith.constant 0 : index
    %6 = vector.load %arg2[%c0_5, %c0_6] : memref<128x128xbf16, #tpu.memory_space<vmem>>, vector<128x128xbf16>
    %7 = vector.extract_strided_slice %5 {offsets = [0, 0], sizes = [8, 128], strides = [1, 1]} : vector<64x128xf32> to vector<8x128xf32>
    %8 = math.tanh %7 : vector<8x128xf32>
    %9 = arith.truncf %8 : vector<8x128xf32> to vector<8x128xbf16>
    %cst_7 = arith.constant dense<0.000000e+00> : vector<8x128xf32>
    %10 = tpu.matmul %9, %6, %cst_7 {dimension_numbers = #tpu.dot_dimension_numbers<[1], [0], [0], [1], [0, 0, 1, 1], [], []>} : vector<8x128xbf16>, vector<128x128xbf16>, vector<8x128xf32> -> vector<8x128xf32>
    %11 = vector.extract_strided_slice %5 {offsets = [8, 0], sizes = [8, 128], strides = [1, 1]} : vector<64x128xf32> to vector<8x128xf32>
    %12 = arith.addf %10, %11 : vector<8x128xf32>
    %13 = math.tanh %12 : vector<8x128xf32>
    %14 = arith.truncf %13 : vector<8x128xf32> to vector<8x128xbf16>
    %cst_8 = arith.constant dense<0.000000e+00> : vector<8x128xf32>
    %15 = tpu.matmul %14, %6, %cst_8 {dimension_numbers = #tpu.dot_dimension_numbers<[1], [0], [0], [1], [0, 0, 1, 1], [], []>} : vector<8x128xbf16>, vector<128x128xbf16>, vector<8x128xf32> -> vector<8x128xf32>
    %16 = vector.extract_strided_slice %5 {offsets = [16, 0], sizes = [8, 128], strides = [1, 1]} : vector<64x128xf32> to vector<8x128xf32>
    %17 = arith.addf %15, %16 : vector<8x128xf32>
    %18 = math.tanh %17 : vector<8x128xf32>
    %19 = arith.truncf %18 : vector<8x128xf32> to vector<8x128xbf16>
    %cst_9 = arith.constant dense<0.000000e+00> : vector<8x128xf32>
    %20 = tpu.matmul %19, %6, %cst_9 {dimension_numbers = #tpu.dot_dimension_numbers<[1], [0], [0], [1], [0, 0, 1, 1], [], []>} : vector<8x128xbf16>, vector<128x128xbf16>, vector<8x128xf32> -> vector<8x128xf32>
    %21 = vector.extract_strided_slice %5 {offsets = [24, 0], sizes = [8, 128], strides = [1, 1]} : vector<64x128xf32> to vector<8x128xf32>
    %22 = arith.addf %20, %21 : vector<8x128xf32>
    %23 = math.tanh %22 : vector<8x128xf32>
    %24 = arith.truncf %23 : vector<8x128xf32> to vector<8x128xbf16>
    %cst_10 = arith.constant dense<0.000000e+00> : vector<8x128xf32>
    %25 = tpu.matmul %24, %6, %cst_10 {dimension_numbers = #tpu.dot_dimension_numbers<[1], [0], [0], [1], [0, 0, 1, 1], [], []>} : vector<8x128xbf16>, vector<128x128xbf16>, vector<8x128xf32> -> vector<8x128xf32>
    %26 = vector.extract_strided_slice %5 {offsets = [32, 0], sizes = [8, 128], strides = [1, 1]} : vector<64x128xf32> to vector<8x128xf32>
    %27 = arith.addf %25, %26 : vector<8x128xf32>
    %28 = math.tanh %27 : vector<8x128xf32>
    %29 = arith.truncf %28 : vector<8x128xf32> to vector<8x128xbf16>
    %cst_11 = arith.constant dense<0.000000e+00> : vector<8x128xf32>
    %30 = tpu.matmul %29, %6, %cst_11 {dimension_numbers = #tpu.dot_dimension_numbers<[1], [0], [0], [1], [0, 0, 1, 1], [], []>} : vector<8x128xbf16>, vector<128x128xbf16>, vector<8x128xf32> -> vector<8x128xf32>
    %31 = vector.extract_strided_slice %5 {offsets = [40, 0], sizes = [8, 128], strides = [1, 1]} : vector<64x128xf32> to vector<8x128xf32>
    %32 = arith.addf %30, %31 : vector<8x128xf32>
    %33 = math.tanh %32 : vector<8x128xf32>
    %34 = arith.truncf %33 : vector<8x128xf32> to vector<8x128xbf16>
    %cst_12 = arith.constant dense<0.000000e+00> : vector<8x128xf32>
    %35 = tpu.matmul %34, %6, %cst_12 {dimension_numbers = #tpu.dot_dimension_numbers<[1], [0], [0], [1], [0, 0, 1, 1], [], []>} : vector<8x128xbf16>, vector<128x128xbf16>, vector<8x128xf32> -> vector<8x128xf32>
    %36 = vector.extract_strided_slice %5 {offsets = [48, 0], sizes = [8, 128], strides = [1, 1]} : vector<64x128xf32> to vector<8x128xf32>
    %37 = arith.addf %35, %36 : vector<8x128xf32>
    %38 = math.tanh %37 : vector<8x128xf32>
    %39 = arith.truncf %38 : vector<8x128xf32> to vector<8x128xbf16>
    %cst_13 = arith.constant dense<0.000000e+00> : vector<8x128xf32>
    %40 = tpu.matmul %39, %6, %cst_13 {dimension_numbers = #tpu.dot_dimension_numbers<[1], [0], [0], [1], [0, 0, 1, 1], [], []>} : vector<8x128xbf16>, vector<128x128xbf16>, vector<8x128xf32> -> vector<8x128xf32>
    %41 = vector.extract_strided_slice %5 {offsets = [56, 0], sizes = [8, 128], strides = [1, 1]} : vector<64x128xf32> to vector<8x128xf32>
    %42 = arith.addf %40, %41 : vector<8x128xf32>
    %43 = math.tanh %42 : vector<8x128xf32>
    %44 = arith.truncf %43 : vector<8x128xf32> to vector<8x128xbf16>
    %c0_14 = arith.constant 0 : index
    %c0_15 = arith.constant 0 : index
    %45 = vector.load %arg4[%c0_14, %c0_15] : memref<128x128xbf16, #tpu.memory_space<vmem>>, vector<128x128xbf16>
    %cst_16 = arith.constant dense<0.000000e+00> : vector<8x128xf32>
    %46 = tpu.matmul %44, %45, %cst_16 {dimension_numbers = #tpu.dot_dimension_numbers<[1], [0], [0], [1], [0, 0, 1, 1], [], []>} : vector<8x128xbf16>, vector<128x128xbf16>, vector<8x128xf32> -> vector<8x128xf32>
    %c0_17 = arith.constant 0 : index
    %c0_18 = arith.constant 0 : index
    %47 = vector.load %arg5[%c0_17, %c0_18] : memref<1x128xf32, #tpu.memory_space<vmem>>, vector<1x128xf32>
    %48 = vector.broadcast %47 : vector<1x128xf32> to vector<8x128xf32>
    %49 = arith.addf %46, %48 : vector<8x128xf32>
    %c0_19 = arith.constant 0 : index
    %c0_20 = arith.constant 0 : index
    %50 = vector.load %arg6[%c0_19, %c0_20] : memref<8x128xf32, #tpu.memory_space<vmem>>, vector<8x128xf32>
    tpu.vector_store %arg6[%c0_19, %c0_20], %49 {strides = array<i32>} : memref<8x128xf32, #tpu.memory_space<vmem>>, vector<8x128xf32>,
    return
  }
}

</mosaic_0001>

<llo_original>
// kernel: simple_rnn_forward.1
$region0: #{simple_rnn_forward.1}
  #allocation0 [shape = 'u32[]', space=smem, size = 0x4, offset = 0x4, fixed_abs, tag = 'smem constant byte address 0x4 - core index']
  #allocation1 [shape = 'u32[144,128]{1,0:T(1,128)}', space=vmem, size = 0x12000, scoped, tag = 'internal scratch']
  %s0 = inlined_call_operand.vmem [shape: bf16[64,16], index: 0, kind: input, shape index: {}]
  %s1 = inlined_call_operand.vmem [shape: bf16[16,128], index: 1, kind: input, shape index: {}]
  %s2 = inlined_call_operand.vmem [shape: bf16[128,128], index: 2, kind: input, shape index: {}]
  %s3 = inlined_call_operand.vmem [shape: f32[1,128], index: 3, kind: input, shape index: {}]
  %s4 = inlined_call_operand.vmem [shape: bf16[128,128], index: 4, kind: input, shape index: {}]
  %s5 = inlined_call_operand.vmem [shape: f32[1,128], index: 5, kind: input, shape index: {}]
  %s6 = inlined_call_operand.hbm [shape: f32[8,128], index: 6, kind: output, shape index: {}]
  %s7 = sld [smem:[#allocation0]]
  $region34: #{simple_rnn_forward.1} parent=0
    _
  %s9 = ssub.s32 1, %s7
  %s10 = scalar_select 0, %s9, %s7
  $region1: #{simple_rnn_forward.1} parent=0
    #allocation2 [shape = 'u8[4096]{0}', space=vmem, size = 0x1000, scoped, tag = 'output window, operand 0, single buffered']
    #allocation3 [shape = 's32[1]{0}', space=sflag, size = 0x4, scoped, tag = 'scoped memory for simple_rnn_forward.1']
    %11 = vsyncpa [#allocation3], 0
    // Predicated region
    $region2: #{simple_rnn_forward.1} parent=1 // pred_check
      _
    $region3: #{simple_rnn_forward.1} parent=1 // pred_check_branch
      %13 = sbr.rel (0) target = $region5
    $region4: #{simple_rnn_forward.1} parent=1 // pred_region
      _
    $region5: #{simple_rnn_forward.1} parent=1 // pred_fallthru
      _
    // Predicated region
    $region6: #{simple_rnn_forward.1} parent=1 // pred_check
      _
    $region7: #{simple_rnn_forward.1} parent=1 // pred_check_branch
      %15 = sbr.rel (0) target = $region9
    $region8: #{simple_rnn_forward.1} parent=1 // pred_region
      _
    $region9: #{simple_rnn_forward.1} parent=1 // pred_fallthru
      _
    // Predicated region
    $region10: #{simple_rnn_forward.1} parent=1 // pred_check
      _
    $region11: #{simple_rnn_forward.1} parent=1 // pred_check_branch
      %17 = sbr.rel (0) target = $region13
    $region12: #{simple_rnn_forward.1} parent=1 // pred_region
      _
    $region13: #{simple_rnn_forward.1} parent=1 // pred_fallthru
      _
    // Predicated region
    $region14: #{simple_rnn_forward.1} parent=1 // pred_check
      _
    $region15: #{simple_rnn_forward.1} parent=1 // pred_check_branch
      %19 = sbr.rel (0) target = $region17
    $region16: #{simple_rnn_forward.1} parent=1 // pred_region
      _
    $region17: #{simple_rnn_forward.1} parent=1 // pred_fallthru
      _
    // Predicated region
    $region18: #{simple_rnn_forward.1} parent=1 // pred_check
      _
    $region19: #{simple_rnn_forward.1} parent=1 // pred_check_branch
      %21 = sbr.rel (0) target = $region21
    $region20: #{simple_rnn_forward.1} parent=1 // pred_region
      _
    $region21: #{simple_rnn_forward.1} parent=1 // pred_fallthru
      _
    // Predicated region
    $region22: #{simple_rnn_forward.1} parent=1 // pred_check
      _
    $region23: #{simple_rnn_forward.1} parent=1 // pred_check_branch
      %23 = sbr.rel (0) target = $region25
    $region24: #{simple_rnn_forward.1} parent=1 // pred_region
      _
    $region25: #{simple_rnn_forward.1} parent=1 // pred_fallthru
      _
    %v25 = vld [vmem:[%s0] sm:$0xf]
    %v26 = vld [vmem:[%s0 + $0x4] sm:$0xf]
    %v27 = vld [vmem:[%s0 + $0x8] sm:$0xf]
    %v28 = vld [vmem:[%s0 + $0xc] sm:$0xf]
    %v29 = vld [vmem:[%s0 + $0x10] sm:$0xf]
    %v30 = vld [vmem:[%s0 + $0x14] sm:$0xf]
    %v31 = vld [vmem:[%s0 + $0x18] sm:$0xf]
    %v32 = vld [vmem:[%s0 + $0x1c] sm:$0xf]
    %v33 = vld [vmem:[%s1] sm:$0xf]
    %v34 = vld [vmem:[%s1 + $0x4] sm:$0xf]
    %v35 = vld [vmem:[%s3] sm:$0x1]
    %v37 = vlaneseq
    %v38 = vshrl.u32 %v37, 7
    %v39 = vsub.s32 0, %v38
    %v40 = vrot.slane %v35, %v39
    %v50 = vunpack.c.l.b16 %v25
    %v51 = vunpack.c.l.b16 %v26
    %v52 = vunpack.c.l.b16 %v27
    %v53 = vunpack.c.l.b16 %v28
    %v54 = vunpack.c.l.b16 %v29
    %v55 = vunpack.c.l.b16 %v30
    %v56 = vunpack.c.l.b16 %v31
    %v57 = vunpack.c.l.b16 %v32
    %v58 = vpack.c.b16 %v51, %v50
    %v59 = vpack.c.b16 %v53, %v52
    %v60 = vpack.c.b16 %v55, %v54
    %v61 = vpack.c.b16 %v57, %v56
    %v64 = vunpack.c.l.b16 %v33
    %v65 = vunpack.c.l.b16 %v34
    %v66 = vpack.c.b16 %v65, %v64
    %vm68 = vcmask 130048
    %v70 = vsel %vm68, %v58, 0
    %v73 = vsel %vm68, %v59, 0
    %v76 = vsel %vm68, %v60, 0
    %v79 = vsel %vm68, %v61, 0
    %81 = vmatprep.subr.bf16.mxu0 0
    %82 = vmatpush1.bf16.msra.mxu0 %v66
    %83 = vmatprep.subr.bf16.mxu0 0
    %84 = vmatpush1.bf16.msra.mxu0 0
    %85 = vmatprep.subr.bf16.mxu0 0
    %86 = vmatpush1.bf16.msra.mxu0 0
    %87 = vmatprep.subr.bf16.mxu0 0
    %88 = vmatpush1.bf16.msra.mxu0 0
    %89 = vmatprep.subr.bf16.mxu0 0
    %90 = vmatpush1.bf16.msra.mxu0 0
    %91 = vmatprep.subr.bf16.mxu0 0
    %92 = vmatpush1.bf16.msra.mxu0 0
    %93 = vmatprep.subr.bf16.mxu0 0
    %94 = vmatpush1.bf16.msra.mxu0 0
    %95 = vmatprep.subr.bf16.mxu0 0
    %96 = vmatpush1.bf16.msra.mxu0 0
    %97 = vmatprep.subr.bf16.mxu0 0
    %98 = vmatpush1.bf16.msra.mxu0 0
    %99 = vmatprep.subr.bf16.mxu0 0
    %100 = vmatpush1.bf16.msra.mxu0 0
    %101 = vmatprep.subr.bf16.mxu0 0
    %102 = vmatpush1.bf16.msra.mxu0 0
    %103 = vmatprep.subr.bf16.mxu0 0
    %104 = vmatpush1.bf16.msra.mxu0 0
    %105 = vmatprep.subr.bf16.mxu0 0
    %106 = vmatpush1.bf16.msra.mxu0 0
    %107 = vmatprep.subr.bf16.mxu0 0
    %108 = vmatpush1.bf16.msra.mxu0 0
    %109 = vmatprep.subr.bf16.mxu0 0
    %110 = vmatpush1.bf16.msra.mxu0 0
    %111 = vmatprep.subr.bf16.mxu0 0
    %112 = vmatpush1.bf16.msra.mxu0 0
    %113 = vmatprep.mubr.bf16.mxu0 0
    %114 = vmatmul.mubr.bf16.gmra.mrb[0].mxu0 %v70
    %v115 = vpop.f32.mrb[0].mxu0
    %v116 = vadd.f32 %v40, %v115
    %v117 = vpop.f32.mrb[0].mxu0
    %v118 = vpop.f32.mrb[0].mxu0
    %v119 = vadd.f32 %v40, %v118
    %v120 = vpop.f32.mrb[0].mxu0
    %121 = vmatprep.mubr.bf16.mxu0 0
    %122 = vmatmul.mubr.bf16.gmra.mrb[0].mxu0 %v73
    %v123 = vpop.f32.mrb[0].mxu0
    %v124 = vadd.f32 %v40, %v123
    %v125 = vpop.f32.mrb[0].mxu0
    %v126 = vpop.f32.mrb[0].mxu0
    %v127 = vadd.f32 %v40, %v126
    %v128 = vpop.f32.mrb[0].mxu0
    %129 = vmatprep.mubr.bf16.mxu0 0
    %130 = vmatmul.mubr.bf16.gmra.mrb[0].mxu0 %v76
    %v131 = vpop.f32.mrb[0].mxu0
    %v132 = vadd.f32 %v40, %v131
    %v133 = vpop.f32.mrb[0].mxu0
    %v134 = vpop.f32.mrb[0].mxu0
    %v135 = vadd.f32 %v40, %v134
    %v136 = vpop.f32.mrb[0].mxu0
    %137 = vmatprep.mubr.bf16.mxu0 0
    %138 = vmatmul.mubr.bf16.gmra.mrb[0].mxu0 %v79
    %v139 = vpop.f32.mrb[0].mxu0
    %v140 = vadd.f32 %v40, %v139
    %v141 = vpop.f32.mrb[0].mxu0
    %v142 = vpop.f32.mrb[0].mxu0
    %v143 = vadd.f32 %v40, %v142
    %v144 = vpop.f32.mrb[0].mxu0
    %145 = vdwg.mxu0
    %v146 = vld [vmem:[%s2] sm:$0xf]
    %v147 = vld [vmem:[%s2 + $0x4] sm:$0xf]
    %v148 = vld [vmem:[%s2 + $0x8] sm:$0xf]
    %v149 = vld [vmem:[%s2 + $0xc] sm:$0xf]
    %v150 = vld [vmem:[%s2 + $0x10] sm:$0xf]
    %v151 = vld [vmem:[%s2 + $0x14] sm:$0xf]
    %v152 = vld [vmem:[%s2 + $0x18] sm:$0xf]
    %v153 = vld [vmem:[%s2 + $0x1c] sm:$0xf]
    %v154 = vld [vmem:[%s2 + $0x20] sm:$0xf]
    %v155 = vld [vmem:[%s2 + $0x24] sm:$0xf]
    %v156 = vld [vmem:[%s2 + $0x28] sm:$0xf]
    %v157 = vld [vmem:[%s2 + $0x2c] sm:$0xf]
    %v158 = vld [vmem:[%s2 + $0x30] sm:$0xf]
    %v159 = vld [vmem:[%s2 + $0x34] sm:$0xf]
    %v160 = vld [vmem:[%s2 + $0x38] sm:$0xf]
    %v161 = vld [vmem:[%s2 + $0x3c] sm:$0xf]
    %v162 = vtanh.pop %v116
    %v163 = vpack.c.bf16 %v162, %v162
    %v180 = vunpack.c.l.b16 %v146
    %v181 = vunpack.c.l.b16 %v147
    %v182 = vunpack.c.l.b16 %v148
    %v183 = vunpack.c.l.b16 %v149
    %v184 = vunpack.c.l.b16 %v150
    %v185 = vunpack.c.l.b16 %v151
    %v186 = vunpack.c.l.b16 %v152
    %v187 = vunpack.c.l.b16 %v153
    %v188 = vunpack.c.l.b16 %v154
    %v189 = vunpack.c.l.b16 %v155
    %v190 = vunpack.c.l.b16 %v156
    %v191 = vunpack.c.l.b16 %v157
    %v192 = vunpack.c.l.b16 %v158
    %v193 = vunpack.c.l.b16 %v159
    %v194 = vunpack.c.l.b16 %v160
    %v195 = vunpack.c.l.b16 %v161
    %v196 = vpack.c.b16 %v181, %v180
    %v197 = vpack.c.b16 %v183, %v182
    %v198 = vpack.c.b16 %v185, %v184
    %v199 = vpack.c.b16 %v187, %v186
    %v200 = vpack.c.b16 %v189, %v188
    %v201 = vpack.c.b16 %v191, %v190
    %v202 = vpack.c.b16 %v193, %v192
    %v203 = vpack.c.b16 %v195, %v194
    %212 = vmatprep.subr.bf16.mxu0 0
    %213 = vmatpush1.bf16.msra.mxu0 %v196
    %214 = vmatprep.subr.bf16.mxu0 0
    %215 = vmatpush1.bf16.msra.mxu0 %v197
    %216 = vmatprep.subr.bf16.mxu0 0
    %217 = vmatpush1.bf16.msra.mxu0 %v198
    %218 = vmatprep.subr.bf16.mxu0 0
    %219 = vmatpush1.bf16.msra.mxu0 %v199
    %220 = vmatprep.subr.bf16.mxu0 0
    %221 = vmatpush1.bf16.msra.mxu0 %v200
    %222 = vmatprep.subr.bf16.mxu0 0
    %223 = vmatpush1.bf16.msra.mxu0 %v201
    %224 = vmatprep.subr.bf16.mxu0 0
    %225 = vmatpush1.bf16.msra.mxu0 %v202
    %226 = vmatprep.subr.bf16.mxu0 0
    %227 = vmatpush1.bf16.msra.mxu0 %v203
    %228 = vmatprep.subr.bf16.mxu0 0
    %229 = vmatpush1.bf16.msra.mxu0 0
    %230 = vmatprep.subr.bf16.mxu0 0
    %231 = vmatpush1.bf16.msra.mxu0 0
    %232 = vmatprep.subr.bf16.mxu0 0
    %233 = vmatpush1.bf16.msra.mxu0 0
    %234 = vmatprep.subr.bf16.mxu0 0
    %235 = vmatpush1.bf16.msra.mxu0 0
    %236 = vmatprep.subr.bf16.mxu0 0
    %237 = vmatpush1.bf16.msra.mxu0 0
    %238 = vmatprep.subr.bf16.mxu0 0
    %239 = vmatpush1.bf16.msra.mxu0 0
    %240 = vmatprep.subr.bf16.mxu0 0
    %241 = vmatpush1.bf16.msra.mxu0 0
    %242 = vmatprep.subr.bf16.mxu0 0
    %243 = vmatpush1.bf16.msra.mxu0 0
    %244 = vmatprep.mubr.bf16.mxu0 0
    %245 = vmatmul.mubr.bf16.gmra.mrb[0].mxu0 %v163
    %v246 = vpop.f32.mrb[0].mxu0
    %v247 = vadd.f32 %v119, %v246
    %v248 = vpop.f32.mrb[0].mxu0
    %v249 = vpop.f32.mrb[0].mxu0
    %v250 = vpop.f32.mrb[0].mxu0
    %251 = vdwg.mxu0
    %v252 = vtanh.pop %v247
    %v253 = vpack.c.bf16 %v252, %v252
    %254 = vmatprep.subr.bf16.mxu0 0
    %255 = vmatpush1.bf16.msra.mxu0 %v196
    %256 = vmatprep.subr.bf16.mxu0 0
    %257 = vmatpush1.bf16.msra.mxu0 %v197
    %258 = vmatprep.subr.bf16.mxu0 0
    %259 = vmatpush1.bf16.msra.mxu0 %v198
    %260 = vmatprep.subr.bf16.mxu0 0
    %261 = vmatpush1.bf16.msra.mxu0 %v199
    %262 = vmatprep.subr.bf16.mxu0 0
    %263 = vmatpush1.bf16.msra.mxu0 %v200
    %264 = vmatprep.subr.bf16.mxu0 0
    %265 = vmatpush1.bf16.msra.mxu0 %v201
    %266 = vmatprep.subr.bf16.mxu0 0
    %267 = vmatpush1.bf16.msra.mxu0 %v202
    %268 = vmatprep.subr.bf16.mxu0 0
    %269 = vmatpush1.bf16.msra.mxu0 %v203
    %270 = vmatprep.subr.bf16.mxu0 0
    %271 = vmatpush1.bf16.msra.mxu0 0
    %272 = vmatprep.subr.bf16.mxu0 0
    %273 = vmatpush1.bf16.msra.mxu0 0
    %274 = vmatprep.subr.bf16.mxu0 0
    %275 = vmatpush1.bf16.msra.mxu0 0
    %276 = vmatprep.subr.bf16.mxu0 0
    %277 = vmatpush1.bf16.msra.mxu0 0
    %278 = vmatprep.subr.bf16.mxu0 0
    %279 = vmatpush1.bf16.msra.mxu0 0
    %280 = vmatprep.subr.bf16.mxu0 0
    %281 = vmatpush1.bf16.msra.mxu0 0
    %282 = vmatprep.subr.bf16.mxu0 0
    %283 = vmatpush1.bf16.msra.mxu0 0
    %284 = vmatprep.subr.bf16.mxu0 0
    %285 = vmatpush1.bf16.msra.mxu0 0
    %286 = vmatprep.mubr.bf16.mxu0 0
    %287 = vmatmul.mubr.bf16.gmra.mrb[0].mxu0 %v253
    %v288 = vpop.f32.mrb[0].mxu0
    %v289 = vadd.f32 %v124, %v288
    %v290 = vpop.f32.mrb[0].mxu0
    %v291 = vpop.f32.mrb[0].mxu0
    %v292 = vpop.f32.mrb[0].mxu0
    %293 = vdwg.mxu0
    %v294 = vtanh.pop %v289
    %v295 = vpack.c.bf16 %v294, %v294
    %296 = vmatprep.subr.bf16.mxu0 0
    %297 = vmatpush1.bf16.msra.mxu0 %v196
    %298 = vmatprep.subr.bf16.mxu0 0
    %299 = vmatpush1.bf16.msra.mxu0 %v197
    %300 = vmatprep.subr.bf16.mxu0 0
    %301 = vmatpush1.bf16.msra.mxu0 %v198
    %302 = vmatprep.subr.bf16.mxu0 0
    %303 = vmatpush1.bf16.msra.mxu0 %v199
    %304 = vmatprep.subr.bf16.mxu0 0
    %305 = vmatpush1.bf16.msra.mxu0 %v200
    %306 = vmatprep.subr.bf16.mxu0 0
    %307 = vmatpush1.bf16.msra.mxu0 %v201
    %308 = vmatprep.subr.bf16.mxu0 0
    %309 = vmatpush1.bf16.msra.mxu0 %v202
    %310 = vmatprep.subr.bf16.mxu0 0
    %311 = vmatpush1.bf16.msra.mxu0 %v203
    %312 = vmatprep.subr.bf16.mxu0 0
    %313 = vmatpush1.bf16.msra.mxu0 0
    %314 = vmatprep.subr.bf16.mxu0 0
    %315 = vmatpush1.bf16.msra.mxu0 0
    %316 = vmatprep.subr.bf16.mxu0 0
    %317 = vmatpush1.bf16.msra.mxu0 0
    %318 = vmatprep.subr.bf16.mxu0 0
    %319 = vmatpush1.bf16.msra.mxu0 0
    %320 = vmatprep.subr.bf16.mxu0 0
    %321 = vmatpush1.bf16.msra.mxu0 0
    %322 = vmatprep.subr.bf16.mxu0 0
    %323 = vmatpush1.bf16.msra.mxu0 0
    %324 = vmatprep.subr.bf16.mxu0 0
    %325 = vmatpush1.bf16.msra.mxu0 0
    %326 = vmatprep.subr.bf16.mxu0 0
    %327 = vmatpush1.bf16.msra.mxu0 0
    %328 = vmatprep.mubr.bf16.mxu0 0
    %329 = vmatmul.mubr.bf16.gmra.mrb[0].mxu0 %v295
    %v330 = vpop.f32.mrb[0].mxu0
    %v331 = vadd.f32 %v127, %v330
    %v332 = vpop.f32.mrb[0].mxu0
    %v333 = vpop.f32.mrb[0].mxu0
    %v334 = vpop.f32.mrb[0].mxu0
    %335 = vdwg.mxu0
    %v336 = vtanh.pop %v331
    %v337 = vpack.c.bf16 %v336, %v336
    %338 = vmatprep.subr.bf16.mxu0 0
    %339 = vmatpush1.bf16.msra.mxu0 %v196
    %340 = vmatprep.subr.bf16.mxu0 0
    %341 = vmatpush1.bf16.msra.mxu0 %v197
    %342 = vmatprep.subr.bf16.mxu0 0
    %343 = vmatpush1.bf16.msra.mxu0 %v198
    %344 = vmatprep.subr.bf16.mxu0 0
    %345 = vmatpush1.bf16.msra.mxu0 %v199
    %346 = vmatprep.subr.bf16.mxu0 0
    %347 = vmatpush1.bf16.msra.mxu0 %v200
    %348 = vmatprep.subr.bf16.mxu0 0
    %349 = vmatpush1.bf16.msra.mxu0 %v201
    %350 = vmatprep.subr.bf16.mxu0 0
    %351 = vmatpush1.bf16.msra.mxu0 %v202
    %352 = vmatprep.subr.bf16.mxu0 0
    %353 = vmatpush1.bf16.msra.mxu0 %v203
    %354 = vmatprep.subr.bf16.mxu0 0
    %355 = vmatpush1.bf16.msra.mxu0 0
    %356 = vmatprep.subr.bf16.mxu0 0
    %357 = vmatpush1.bf16.msra.mxu0 0
    %358 = vmatprep.subr.bf16.mxu0 0
    %359 = vmatpush1.bf16.msra.mxu0 0
    %360 = vmatprep.subr.bf16.mxu0 0
    %361 = vmatpush1.bf16.msra.mxu0 0
    %362 = vmatprep.subr.bf16.mxu0 0
    %363 = vmatpush1.bf16.msra.mxu0 0
    %364 = vmatprep.subr.bf16.mxu0 0
    %365 = vmatpush1.bf16.msra.mxu0 0
    %366 = vmatprep.subr.bf16.mxu0 0
    %367 = vmatpush1.bf16.msra.mxu0 0
    %368 = vmatprep.subr.bf16.mxu0 0
    %369 = vmatpush1.bf16.msra.mxu0 0
    %370 = vmatprep.mubr.bf16.mxu0 0
    %371 = vmatmul.mubr.bf16.gmra.mrb[0].mxu0 %v337
    %v372 = vpop.f32.mrb[0].mxu0
    %v373 = vadd.f32 %v132, %v372
    %v374 = vpop.f32.mrb[0].mxu0
    %v375 = vpop.f32.mrb[0].mxu0
    %v376 = vpop.f32.mrb[0].mxu0
    %377 = vdwg.mxu0
    %v378 = vtanh.pop %v373
    %v379 = vpack.c.bf16 %v378, %v378
    %380 = vmatprep.subr.bf16.mxu0 0
    %381 = vmatpush1.bf16.msra.mxu0 %v196
    %382 = vmatprep.subr.bf16.mxu0 0
    %383 = vmatpush1.bf16.msra.mxu0 %v197
    %384 = vmatprep.subr.bf16.mxu0 0
    %385 = vmatpush1.bf16.msra.mxu0 %v198
    %386 = vmatprep.subr.bf16.mxu0 0
    %387 = vmatpush1.bf16.msra.mxu0 %v199
    %388 = vmatprep.subr.bf16.mxu0 0
    %389 = vmatpush1.bf16.msra.mxu0 %v200
    %390 = vmatprep.subr.bf16.mxu0 0
    %391 = vmatpush1.bf16.msra.mxu0 %v201
    %392 = vmatprep.subr.bf16.mxu0 0
    %393 = vmatpush1.bf16.msra.mxu0 %v202
    %394 = vmatprep.subr.bf16.mxu0 0
    %395 = vmatpush1.bf16.msra.mxu0 %v203
    %396 = vmatprep.subr.bf16.mxu0 0
    %397 = vmatpush1.bf16.msra.mxu0 0
    %398 = vmatprep.subr.bf16.mxu0 0
    %399 = vmatpush1.bf16.msra.mxu0 0
    %400 = vmatprep.subr.bf16.mxu0 0
    %401 = vmatpush1.bf16.msra.mxu0 0
    %402 = vmatprep.subr.bf16.mxu0 0
    %403 = vmatpush1.bf16.msra.mxu0 0
    %404 = vmatprep.subr.bf16.mxu0 0
    %405 = vmatpush1.bf16.msra.mxu0 0
    %406 = vmatprep.subr.bf16.mxu0 0
    %407 = vmatpush1.bf16.msra.mxu0 0
    %408 = vmatprep.subr.bf16.mxu0 0
    %409 = vmatpush1.bf16.msra.mxu0 0
    %410 = vmatprep.subr.bf16.mxu0 0
    %411 = vmatpush1.bf16.msra.mxu0 0
    %412 = vmatprep.mubr.bf16.mxu0 0
    %413 = vmatmul.mubr.bf16.gmra.mrb[0].mxu0 %v379
    %v414 = vpop.f32.mrb[0].mxu0
    %v415 = vadd.f32 %v135, %v414
    %v416 = vpop.f32.mrb[0].mxu0
    %v417 = vpop.f32.mrb[0].mxu0
    %v418 = vpop.f32.mrb[0].mxu0
    %419 = vdwg.mxu0
    %v420 = vtanh.pop %v415
    %v421 = vpack.c.bf16 %v420, %v420
    %422 = vmatprep.subr.bf16.mxu0 0
    %423 = vmatpush1.bf16.msra.mxu0 %v196
    %424 = vmatprep.subr.bf16.mxu0 0
    %425 = vmatpush1.bf16.msra.mxu0 %v197
    %426 = vmatprep.subr.bf16.mxu0 0
    %427 = vmatpush1.bf16.msra.mxu0 %v198
    %428 = vmatprep.subr.bf16.mxu0 0
    %429 = vmatpush1.bf16.msra.mxu0 %v199
    %430 = vmatprep.subr.bf16.mxu0 0
    %431 = vmatpush1.bf16.msra.mxu0 %v200
    %432 = vmatprep.subr.bf16.mxu0 0
    %433 = vmatpush1.bf16.msra.mxu0 %v201
    %434 = vmatprep.subr.bf16.mxu0 0
    %435 = vmatpush1.bf16.msra.mxu0 %v202
    %436 = vmatprep.subr.bf16.mxu0 0
    %437 = vmatpush1.bf16.msra.mxu0 %v203
    %438 = vmatprep.subr.bf16.mxu0 0
    %439 = vmatpush1.bf16.msra.mxu0 0
    %440 = vmatprep.subr.bf16.mxu0 0
    %441 = vmatpush1.bf16.msra.mxu0 0
    %442 = vmatprep.subr.bf16.mxu0 0
    %443 = vmatpush1.bf16.msra.mxu0 0
    %444 = vmatprep.subr.bf16.mxu0 0
    %445 = vmatpush1.bf16.msra.mxu0 0
    %446 = vmatprep.subr.bf16.mxu0 0
    %447 = vmatpush1.bf16.msra.mxu0 0
    %448 = vmatprep.subr.bf16.mxu0 0
    %449 = vmatpush1.bf16.msra.mxu0 0
    %450 = vmatprep.subr.bf16.mxu0 0
    %451 = vmatpush1.bf16.msra.mxu0 0
    %452 = vmatprep.subr.bf16.mxu0 0
    %453 = vmatpush1.bf16.msra.mxu0 0
    %454 = vmatprep.mubr.bf16.mxu0 0
    %455 = vmatmul.mubr.bf16.gmra.mrb[0].mxu0 %v421
    %v456 = vpop.f32.mrb[0].mxu0
    %v457 = vadd.f32 %v140, %v456
    %v458 = vpop.f32.mrb[0].mxu0
    %v459 = vpop.f32.mrb[0].mxu0
    %v460 = vpop.f32.mrb[0].mxu0
    %461 = vdwg.mxu0
    %v462 = vtanh.pop %v457
    %v463 = vpack.c.bf16 %v462, %v462
    %464 = vmatprep.subr.bf16.mxu0 0
    %465 = vmatpush1.bf16.msra.mxu0 %v196
    %466 = vmatprep.subr.bf16.mxu0 0
    %467 = vmatpush1.bf16.msra.mxu0 %v197
    %468 = vmatprep.subr.bf16.mxu0 0
    %469 = vmatpush1.bf16.msra.mxu0 %v198
    %470 = vmatprep.subr.bf16.mxu0 0
    %471 = vmatpush1.bf16.msra.mxu0 %v199
    %472 = vmatprep.subr.bf16.mxu0 0
    %473 = vmatpush1.bf16.msra.mxu0 %v200
    %474 = vmatprep.subr.bf16.mxu0 0
    %475 = vmatpush1.bf16.msra.mxu0 %v201
    %476 = vmatprep.subr.bf16.mxu0 0
    %477 = vmatpush1.bf16.msra.mxu0 %v202
    %478 = vmatprep.subr.bf16.mxu0 0
    %479 = vmatpush1.bf16.msra.mxu0 %v203
    %480 = vmatprep.subr.bf16.mxu0 0
    %481 = vmatpush1.bf16.msra.mxu0 0
    %482 = vmatprep.subr.bf16.mxu0 0
    %483 = vmatpush1.bf16.msra.mxu0 0
    %484 = vmatprep.subr.bf16.mxu0 0
    %485 = vmatpush1.bf16.msra.mxu0 0
    %486 = vmatprep.subr.bf16.mxu0 0
    %487 = vmatpush1.bf16.msra.mxu0 0
    %488 = vmatprep.subr.bf16.mxu0 0
    %489 = vmatpush1.bf16.msra.mxu0 0
    %490 = vmatprep.subr.bf16.mxu0 0
    %491 = vmatpush1.bf16.msra.mxu0 0
    %492 = vmatprep.subr.bf16.mxu0 0
    %493 = vmatpush1.bf16.msra.mxu0 0
    %494 = vmatprep.subr.bf16.mxu0 0
    %495 = vmatpush1.bf16.msra.mxu0 0
    %496 = vmatprep.mubr.bf16.mxu0 0
    %497 = vmatmul.mubr.bf16.gmra.mrb[0].mxu0 %v463
    %v498 = vpop.f32.mrb[0].mxu0
    %v499 = vadd.f32 %v143, %v498
    %v500 = vpop.f32.mrb[0].mxu0
    %v501 = vpop.f32.mrb[0].mxu0
    %v502 = vpop.f32.mrb[0].mxu0
    %503 = vdwg.mxu0
    %v504 = vtanh.pop %v499
    %v505 = vpack.c.bf16 %v504, %v504
    %v506 = vld [vmem:[%s4] sm:$0xf]
    %v507 = vld [vmem:[%s4 + $0x4] sm:$0xf]
    %v508 = vld [vmem:[%s4 + $0x8] sm:$0xf]
    %v509 = vld [vmem:[%s4 + $0xc] sm:$0xf]
    %v510 = vld [vmem:[%s4 + $0x10] sm:$0xf]
    %v511 = vld [vmem:[%s4 + $0x14] sm:$0xf]
    %v512 = vld [vmem:[%s4 + $0x18] sm:$0xf]
    %v513 = vld [vmem:[%s4 + $0x1c] sm:$0xf]
    %v514 = vld [vmem:[%s4 + $0x20] sm:$0xf]
    %v515 = vld [vmem:[%s4 + $0x24] sm:$0xf]
    %v516 = vld [vmem:[%s4 + $0x28] sm:$0xf]
    %v517 = vld [vmem:[%s4 + $0x2c] sm:$0xf]
    %v518 = vld [vmem:[%s4 + $0x30] sm:$0xf]
    %v519 = vld [vmem:[%s4 + $0x34] sm:$0xf]
    %v520 = vld [vmem:[%s4 + $0x38] sm:$0xf]
    %v521 = vld [vmem:[%s4 + $0x3c] sm:$0xf]
    %v522 = vld [vmem:[%s5] sm:$0x1]
    %v524 = vlaneseq
    %v525 = vshrl.u32 %v524, 7
    %v526 = vsub.s32 0, %v525
    %v527 = vrot.slane %v522, %v526
    %v545 = vunpack.c.l.b16 %v506
    %v546 = vunpack.c.l.b16 %v507
    %v547 = vunpack.c.l.b16 %v508
    %v548 = vunpack.c.l.b16 %v509
    %v549 = vunpack.c.l.b16 %v510
    %v550 = vunpack.c.l.b16 %v511
    %v551 = vunpack.c.l.b16 %v512
    %v552 = vunpack.c.l.b16 %v513
    %v553 = vunpack.c.l.b16 %v514
    %v554 = vunpack.c.l.b16 %v515
    %v555 = vunpack.c.l.b16 %v516
    %v556 = vunpack.c.l.b16 %v517
    %v557 = vunpack.c.l.b16 %v518
    %v558 = vunpack.c.l.b16 %v519
    %v559 = vunpack.c.l.b16 %v520
    %v560 = vunpack.c.l.b16 %v521
    %v561 = vpack.c.b16 %v546, %v545
    %v562 = vpack.c.b16 %v548, %v547
    %v563 = vpack.c.b16 %v550, %v549
    %v564 = vpack.c.b16 %v552, %v551
    %v565 = vpack.c.b16 %v554, %v553
    %v566 = vpack.c.b16 %v556, %v555
    %v567 = vpack.c.b16 %v558, %v557
    %v568 = vpack.c.b16 %v560, %v559
    %577 = vmatprep.subr.bf16.mxu0 0
    %578 = vmatpush1.bf16.msra.mxu0 %v561
    %579 = vmatprep.subr.bf16.mxu0 0
    %580 = vmatpush1.bf16.msra.mxu0 %v562
    %581 = vmatprep.subr.bf16.mxu0 0
    %582 = vmatpush1.bf16.msra.mxu0 %v563
    %583 = vmatprep.subr.bf16.mxu0 0
    %584 = vmatpush1.bf16.msra.mxu0 %v564
    %585 = vmatprep.subr.bf16.mxu0 0
    %586 = vmatpush1.bf16.msra.mxu0 %v565
    %587 = vmatprep.subr.bf16.mxu0 0
    %588 = vmatpush1.bf16.msra.mxu0 %v566
    %589 = vmatprep.subr.bf16.mxu0 0
    %590 = vmatpush1.bf16.msra.mxu0 %v567
    %591 = vmatprep.subr.bf16.mxu0 0
    %592 = vmatpush1.bf16.msra.mxu0 %v568
    %593 = vmatprep.subr.bf16.mxu0 0
    %594 = vmatpush1.bf16.msra.mxu0 0
    %595 = vmatprep.subr.bf16.mxu0 0
    %596 = vmatpush1.bf16.msra.mxu0 0
    %597 = vmatprep.subr.bf16.mxu0 0
    %598 = vmatpush1.bf16.msra.mxu0 0
    %599 = vmatprep.subr.bf16.mxu0 0
    %600 = vmatpush1.bf16.msra.mxu0 0
    %601 = vmatprep.subr.bf16.mxu0 0
    %602 = vmatpush1.bf16.msra.mxu0 0
    %603 = vmatprep.subr.bf16.mxu0 0
    %604 = vmatpush1.bf16.msra.mxu0 0
    %605 = vmatprep.subr.bf16.mxu0 0
    %606 = vmatpush1.bf16.msra.mxu0 0
    %607 = vmatprep.subr.bf16.mxu0 0
    %608 = vmatpush1.bf16.msra.mxu0 0
    %609 = vmatprep.mubr.bf16.mxu0 0
    %610 = vmatmul.mubr.bf16.gmra.mrb[0].mxu0 %v505
    %v611 = vpop.f32.mrb[0].mxu0
    %v612 = vadd.f32 %v527, %v611
    %v613 = vpop.f32.mrb[0].mxu0
    %v614 = vpop.f32.mrb[0].mxu0
    %v615 = vpop.f32.mrb[0].mxu0
    %616 = vdwg.mxu0
    %617 = vst [vmem:[#allocation2] sm:$0xff] %v612
    // Predicated region
    $region26: #{simple_rnn_forward.1} parent=1 // pred_check
      _
    $region27: #{simple_rnn_forward.1} parent=1 // pred_check_branch
      %619 = sbr.rel (0) target = $region29
    $region28: #{simple_rnn_forward.1} parent=1 // pred_region
      %s621 = ssub.s32 128, 128
      %622 = vsyncadd [#allocation3], %s621
      %s624 = sshll.u32 [#allocation2], 4
      %s625 = int_to_ptr.vmem [resolvable:$true] %s624
      %627 = dma.vmem_to_hbm [thread:$0]  %s625, 128, %s6, [#allocation3]
    $region29: #{simple_rnn_forward.1} parent=1 // pred_fallthru
      _
    // Predicated region
    $region30: #{simple_rnn_forward.1} parent=1 // pred_check
      _
    $region31: #{simple_rnn_forward.1} parent=1 // pred_check_branch
      %629 = sbr.rel (0) target = $region33
    $region32: #{simple_rnn_forward.1} parent=1 // pred_region
      %630 = dma.done [#allocation3], 128
    $region33: #{simple_rnn_forward.1} parent=1 // pred_fallthru
      _
    %631 = vsyncpa [#allocation3], 1

</llo_original>
